<compile_context>
chip_gen: v6e
topology: v6e:2x2x1
jax: 0.10.0
libtpu: 0.0.40
codegen_flags: <defaults>
</compile_context>

<pallas_src>
import functools

import jax
import jax.numpy as jnp
from jax.experimental import pallas as pl
from jax.experimental.pallas import tpu as pltpu


def _conv_relu_kernel(w_ref, b_ref, p_ref, o_ref):
    # w_ref: (Co, K)        compute dtype (bf16)
    # b_ref: (Co, 1)        f32
    # p_ref: (1, K, ts)     compute dtype
    # o_ref: (1, Co, ts)    f32  (lane-dense: big spatial dim on the lane axis)
    acc = jnp.dot(w_ref[...], p_ref[0], preferred_element_type=jnp.float32)  # (Co, ts)
    acc = acc + b_ref[...]                         # bias broadcast across lanes
    o_ref[0] = jnp.maximum(acc, 0.0).astype(o_ref.dtype)


def _vmem_budget_bytes():
    """~3/4 of this generation's per-core VMEM (48 MiB v7x, 96 MiB v5e/v6e)."""
    cap = None
    try:
        info = pltpu.get_tpu_info()
        cap = int(getattr(info, "vmem_capacity_bytes", 0)) or None
    except Exception:
        cap = None
    if cap is None:
        cap = 64 * 1024 * 1024          # conservative fallback: v7x physical VMEM
    return (3 * cap) // 4


def _choose_spatial_tile(S, K, Co, in_itemsize, N, budget):
    """Biggest 128-multiple lane tile that fits the VMEM budget (and gives the
    2-TC generations at least two grid tiles when N == 1)."""
    per_lane = 2 * K * in_itemsize + 2 * Co * 4          # dbl-buf patches + dbl-buf f32 out
    fixed = 2 * (Co * K * in_itemsize + Co * 4) + (256 << 10)  # weights/bias bufs + slack
    ts = max(128, (budget - fixed) // per_lane)
    ts = min(ts, 32768)                                  # keep per-step DMA to a few MiB
    ts = (ts // 128) * 128
    if ts >= S:
        if N == 1 and S > 256:
            # guarantee >= 2 independent spatial tiles so both TensorCores of a
            # 2-TC chip (v7x) get work at batch 1 (no-op for v5e/v6e perf).
            ts = (((S + 1) // 2) + 127) // 128 * 128
        else:
            ts = S                                       # single full-extent tile
    return ts


def downsampling_conv_block(x, weight, bias, *, spatial_tile=None,
                            compute_dtype=jnp.bfloat16):
    """Forward of DownsamplingConvBlock(normalization='none').

    x:      (N, Cin, D, H, W)  float32
    weight: (Cout, Cin, 2, 2, 2)  (PyTorch Conv3d layout)
    bias:   (Cout,)
    returns (N, Cout, D//2, H//2, W//2) float32
    """
    N, Ci, D, H, W = x.shape
    Co = weight.shape[0]
    Do, Ho, Wo = D // 2, H // 2, W // 2
    S = Do * Ho * Wo
    K = Ci * 8
    isz = jnp.dtype(compute_dtype).itemsize

    # ---- patch extraction: one strided pass over x, fused by XLA with the bf16 cast.
    # K order = (ci, kd, kh, kw) to match weight.reshape(Co, Ci*8); spatial goes last
    # (lane axis) so the kernel output is already in NC(DHW) order (no output transpose).
    xp = x.reshape(N, Ci, Do, 2, Ho, 2, Wo, 2)
    xp = jnp.transpose(xp, (0, 1, 3, 5, 7, 2, 4, 6))       # (N, Ci, 2, 2, 2, Do, Ho, Wo)
    patches = xp.reshape(N, K, S).astype(compute_dtype)    # (N, K, S)

    w_mat = weight.reshape(Co, K).astype(compute_dtype)    # (Co, K)
    b_mat = bias.reshape(Co, 1).astype(jnp.float32)        # (Co, 1)

    # ---- tile + VMEM budget (per generation).
    budget = _vmem_budget_bytes()
    if spatial_tile is None:
        ts = _choose_spatial_tile(S, K, Co, isz, N, budget)
    else:
        ts = min(int(spatial_tile), S)
        if ts < S:
            ts = max(128, (ts // 128) * 128)               # keep the (8,128) block rule
    n_s_tiles = pl.cdiv(S, ts)                             # ragged tail handled by Pallas
                                                           # (clamped read / masked store)

    # footprint: double-buffered patch + output tiles, plus grid-invariant weights/bias
    # (counted once per buffer; no extra 2x on top).  pipeline_mode=pl.Buffered(1) on the
    # weight/bias specs would drop their second (unused) buffer; negligible at these sizes.
    footprint = (2 * K * ts * isz
                 + 2 * Co * ts * 4
                 + 2 * (Co * K * isz + Co * 4))
    vmem_limit = int(min(budget, max(footprint + (4 << 20), 16 << 20)))

    out = pl.pallas_call(
        _conv_relu_kernel,
        out_shape=jax.ShapeDtypeStruct((N, Co, S), x.dtype),
        grid_spec=pltpu.PrefetchScalarGridSpec(
            num_scalar_prefetch=0,
            grid=(N, n_s_tiles),
            in_specs=[
                # weight / bias are grid-invariant (constant index_map): DMA'd once.
                pl.BlockSpec((Co, K), lambda n, s: (0, 0)),
                pl.BlockSpec((Co, 1), lambda n, s: (0, 0)),
                pl.BlockSpec((1, K, ts), lambda n, s: (n, 0, s)),
            ],
            out_specs=pl.BlockSpec((1, Co, ts), lambda n, s: (n, 0, s)),
        ),
        compiler_params=pltpu.CompilerParams(
            dimension_semantics=("parallel", "parallel"),
            vmem_limit_bytes=vmem_limit),
    )(w_mat, b_mat, patches)

    return out.reshape(N, Co, Do, Ho, Wo)                  # free reshape, already NCDHW


def _reference(x, weight, bias, compute_dtype=jnp.bfloat16):
    # pure-JAX reference: Conv3d(k=2, s=2) + ReLU, with the same input quantization
    # as the kernel (so the comparison isolates the kernel math).
    xq = x.astype(compute_dtype).astype(jnp.float32)
    wq = weight.astype(compute_dtype).astype(jnp.float32)
    y = jax.lax.conv_general_dilated(
        xq, wq, window_strides=(2, 2, 2), padding="VALID",
        dimension_numbers=("NCDHW", "OIDHW", "NCDHW"),
        precision=jax.lax.Precision.HIGHEST)
    y = y + bias.reshape(1, -1, 1, 1, 1)
    return jnp.maximum(y, 0.0)


if __name__ == "__main__":
    key = jax.random.PRNGKey(0)
    k_x, k_w, k_b = jax.random.split(key, 3)

    N, Cin, Cout = 2, 4, 8
    D = H = W = 16                      # output spatial 8x8x8 -> S = 512

    x = jax.random.normal(k_x, (N, Cin, D, H, W), dtype=jnp.float32)

    # deterministic PyTorch-style init: U(-1/sqrt(fan_in), 1/sqrt(fan_in)), fan_in = Cin*8
    fan_in = Cin * 2 * 2 * 2
    bound = 1.0 / (fan_in ** 0.5)
    weight = jax.random.uniform(k_w, (Cout, Cin, 2, 2, 2),
                                minval=-bound, maxval=bound, dtype=jnp.float32)
    bias = jax.random.uniform(k_b, (Cout,), minval=-bound, maxval=bound,
                              dtype=jnp.float32)

    fwd = jax.jit(downsampling_conv_block)

    # 1) basic path (single full-extent spatial tile)
    out = jax.block_until_ready(fwd(x, weight, bias))
    ref = _reference(x, weight, bias)
    assert out.shape == (N, Cout, D // 2, H // 2, W // 2), out.shape
    assert jnp.allclose(out, ref, atol=2e-3, rtol=2e-3), \
        float(jnp.max(jnp.abs(out - ref)))

    # 2) multi-tile + ragged (masked) tail: S = 729 with a forced 256-lane tile,
    #    no jnp.pad / output slice copies.
    D2 = H2 = W2 = 18
    x2 = jax.random.normal(k_x, (N, Cin, D2, H2, W2), dtype=jnp.float32)
    fwd_tiled = jax.jit(functools.partial(downsampling_conv_block, spatial_tile=256))
    out2 = jax.block_until_ready(fwd_tiled(x2, weight, bias))
    ref2 = _reference(x2, weight, bias)
    assert out2.shape == (N, Cout, D2 // 2, H2 // 2, W2 // 2), out2.shape
    assert jnp.allclose(out2, ref2, atol=2e-3, rtol=2e-3), \
        float(jnp.max(jnp.abs(out2 - ref2)))

    # 3) batch-1 path: spatial dim auto-split into >=2 tiles (keeps both TCs busy on v7x)
    x3 = x[:1]
    out3 = jax.block_until_ready(fwd(x3, weight, bias))
    ref3 = _reference(x3, weight, bias)
    assert out3.shape == (1, Cout, D // 2, H // 2, W // 2), out3.shape
    assert jnp.allclose(out3, ref3, atol=2e-3, rtol=2e-3), \
        float(jnp.max(jnp.abs(out3 - ref3)))

    print("KERNEL_OK")
</pallas_src>

<mosaic_0001>
module attributes {stable_mosaic.version = 11 : i64} {
  func.func @_conv_relu_kernel(%arg0: i32, %arg1: i32, %arg2: memref<8x32xbf16, #tpu.memory_space<vmem>>, %arg3: memref<8x1xf32, #tpu.memory_space<vmem>>, %arg4: memref<1x32x512xbf16, #tpu.memory_space<vmem>>, %arg5: memref<1x8x512xf32, #tpu.memory_space<vmem>>) attributes {dimension_semantics = [#tpu.dimension_semantics<parallel>, #tpu.dimension_semantics<parallel>], iteration_bounds = array<i64: 2, 1>, scalar_prefetch = 0 : i64, scratch_operands = 0 : i64, tpu.core_type = #tpu.core_type<tc>, window_params = [{pipeline_mode = #tpu.pipeline_mode<synchronous>, transform_indices = @transform_0, window_bounds = array<i64: 8, 32>}, {pipeline_mode = #tpu.pipeline_mode<synchronous>, transform_indices = @transform_1, window_bounds = array<i64: 8, 1>}, {transform_indices = @transform_2, window_bounds = array<i64: 1, 32, 512>}, {transform_indices = @transform_3, window_bounds = array<i64: 1, 8, 512>}]} {
    %c0 = arith.constant 0 : index
    %c0_0 = arith.constant 0 : index
    %0 = vector.load %arg2[%c0, %c0_0] : memref<8x32xbf16, #tpu.memory_space<vmem>>, vector<8x32xbf16>
    %c0_1 = arith.constant 0 : index
    %c0_2 = arith.constant 0 : index
    %c0_3 = arith.constant 0 : index
    %1 = vector.load %arg4[%c0_1, %c0_2, %c0_3] : memref<1x32x512xbf16, #tpu.memory_space<vmem>>, vector<1x32x512xbf16>
    %2 = vector.shape_cast %1 : vector<1x32x512xbf16> to vector<32x512xbf16>
    %cst = arith.constant dense<0.000000e+00> : vector<8x512xf32>
    %3 = tpu.matmul %0, %2, %cst {dimension_numbers = #tpu.dot_dimension_numbers<[1], [0], [0], [1], [0, 0, 1, 1], [], []>} : vector<8x32xbf16>, vector<32x512xbf16>, vector<8x512xf32> -> vector<8x512xf32>
    %c0_4 = arith.constant 0 : index
    %c0_5 = arith.constant 0 : index
    %4 = vector.load %arg3[%c0_4, %c0_5] : memref<8x1xf32, #tpu.memory_space<vmem>>, vector<8x1xf32>
    %5 = vector.broadcast %4 : vector<8x1xf32> to vector<8x512xf32>
    %6 = arith.addf %3, %5 : vector<8x512xf32>
    %cst_6 = arith.constant 0.000000e+00 : f32
    %7 = vector.broadcast %cst_6 : f32 to vector<8x512xf32>
    %8 = arith.maximumf %6, %7 : vector<8x512xf32>
    %c0_7 = arith.constant 0 : index
    %c0_8 = arith.constant 0 : index
    %c0_9 = arith.constant 0 : index
    %9 = vector.load %arg5[%c0_7, %c0_8, %c0_9] : memref<1x8x512xf32, #tpu.memory_space<vmem>>, vector<1x8x512xf32>
    %10 = vector.shape_cast %9 : vector<1x8x512xf32> to vector<8x512xf32>
    %11 = vector.shape_cast %8 : vector<8x512xf32> to vector<1x8x512xf32>
    tpu.vector_store %arg5[%c0_7, %c0_8, %c0_9], %11 {strides = array<i32>} : memref<1x8x512xf32, #tpu.memory_space<vmem>>, vector<1x8x512xf32>,
    return
  }
  func.func @transform_0(%arg0: i32, %arg1: i32) -> (i32, i32) {
    %c0_i32 = arith.constant 0 : i32
    %c0_i32_0 = arith.constant 0 : i32
    %c0_i32_1 = arith.constant 0 : i32
    return %c0_i32, %c0_i32_0 : i32, i32
  }
  func.func @transform_1(%arg0: i32, %arg1: i32) -> (i32, i32) {
    %c0_i32 = arith.constant 0 : i32
    %c0_i32_0 = arith.constant 0 : i32
    %c0_i32_1 = arith.constant 0 : i32
    return %c0_i32, %c0_i32_0 : i32, i32
  }
  func.func @transform_2(%arg0: i32, %arg1: i32) -> (i32, i32, i32) {
    %c0_i32 = arith.constant 0 : i32
    %c0_i32_0 = arith.constant 0 : i32
    return %arg0, %c0_i32, %arg1 : i32, i32, i32
  }
  func.func @transform_3(%arg0: i32, %arg1: i32) -> (i32, i32, i32) {
    %c0_i32 = arith.constant 0 : i32
    %c0_i32_0 = arith.constant 0 : i32
    return %arg0, %c0_i32, %arg1 : i32, i32, i32
  }
}

</mosaic_0001>

<llo_original>
// kernel: downsampling_conv_block.1
$region0: #{downsampling_conv_block.1}
  #allocation0 [shape = 'u32[]', space=smem, size = 0x4, offset = 0x4, fixed_abs, tag = 'smem constant byte address 0x4 - core index']
  #allocation1 [shape = 'u32[144,128]{1,0:T(1,128)}', space=vmem, size = 0x12000, scoped, tag = 'internal scratch']
  %s0 = inlined_call_operand.vmem [shape: bf16[8,32], index: 0, kind: input, shape index: {}]
  %s1 = inlined_call_operand.vmem [shape: f32[8,1], index: 1, kind: input, shape index: {}]
  %s2 = inlined_call_operand.vmem [shape: bf16[2,32,512], index: 2, kind: input, shape index: {}]
  %s3 = inlined_call_operand.vmem [shape: f32[2,8,512], index: 3, kind: output, shape index: {}]
  %s4 = sld [smem:[#allocation0]]
  $region45: #{downsampling_conv_block.1} parent=0
    _
  %s6 = ssub.s32 1, %s4
  %s7 = scalar_select 0, %s6, %s4
  loop: start=0, step=1, limit=4
  $region2: #{downsampling_conv_block.1} parent=0 // loop_pre_header
    _
  $region3: #{downsampling_conv_block.1} parent=0 // loop_header
    %s9 = sphi 0, %s13
    %p10 = scmp.ge.s32.totalorder %s9, 4
    %s16 = sphi 0, %s28
    %s17 = sphi 0, %s24
    %s18 = sphi 0, %s16
    %s19 = sphi 0, %s17
    %s20 = sphi 0, %s18
    %s21 = sphi 0, %s19
    %s29 = sphi 0, %s29
    %s31 = sphi 0, %s29
    %s32 = sphi 0, %s31
    %s46 = sphi 0, %s32
    %s50 = sphi 0, %s50
    %s52 = sphi 0, %s50
    %s53 = sphi 0, %s52
    %s67 = sphi 0, %s53
    %s75 = sphi 0, %s77
    %s78 = sphi 0, %s75
    %s79 = sphi 0, %s78
    %s95 = sphi 0, %s79
    %s103 = sphi 0, %s105
    %s106 = sphi 0, %s103
    %s107 = sphi 0, %s106
    %s123 = sphi 0, %s107
  $region4: #{downsampling_conv_block.1} parent=0 // loop_header_branch
    %12 = sbr.rel (%p10) target = $region8
  $region5: #{downsampling_conv_block.1} parent=0 // loop_body
    %s14 = ssub.s32 %s9, 1
    %s15 = ssub.s32 %s9, 2
    %s22 = sadd.s32 1, %s17
    %p23 = scmp.ge.s32.totalorder %s22, 1
    %s24 = scalar_select %p23, 0, %s22
    %s25 = sadd.s32 1, %s16
    %s26 = scalar_select %p23, %s25, %s16
    %p27 = scmp.ge.s32.totalorder %s26, 2
    %s28 = scalar_select %p27, 0, %s26
    %s30 = sadd.s32 %s29, 1
    %p33 = scmp.eq.s32.totalorder %s9, 1
    %p34 = scmp.ne.s32.totalorder %s29, %s31
    %p35 = scmp.eq.s32.totalorder %s9, 0
    %p36 = por %p34, %p35
    %p37 = scmp.ne.s32.totalorder %s29, %s31
    %p38 = scmp.eq.s32.totalorder %s14, 1
    %p39 = por %p37, %p38
    %p40 = scmp.ne.s32.totalorder %s31, %s32
    %p41 = scmp.eq.s32.totalorder %s14, 0
    %p42 = por %p40, %p41
    %p43 = scmp.ne.s32.totalorder %s31, %s32
    %p44 = scmp.eq.s32.totalorder %s15, 1
    %p45 = por %p43, %p44
    %p47 = scmp.ne.s32.totalorder %s32, %s46
    %p48 = scmp.eq.s32.totalorder %s15, 0
    %p49 = por %p47, %p48
    %s51 = sadd.s32 %s50, 1
    %p54 = scmp.eq.s32.totalorder %s9, 1
    %p55 = scmp.ne.s32.totalorder %s50, %s52
    %p56 = scmp.eq.s32.totalorder %s9, 0
    %p57 = por %p55, %p56
    %p58 = scmp.ne.s32.totalorder %s50, %s52
    %p59 = scmp.eq.s32.totalorder %s14, 1
    %p60 = por %p58, %p59
    %p61 = scmp.ne.s32.totalorder %s52, %s53
    %p62 = scmp.eq.s32.totalorder %s14, 0
    %p63 = por %p61, %p62
    %p64 = scmp.ne.s32.totalorder %s52, %s53
    %p65 = scmp.eq.s32.totalorder %s15, 1
    %p66 = por %p64, %p65
    %p68 = scmp.ne.s32.totalorder %s53, %s67
    %p69 = scmp.eq.s32.totalorder %s15, 0
    %p70 = por %p68, %p69
    %s71 = ssub.s32 %s16, %s28
    %s72 = ssub.s32 %s17, %s24
    %s73 = sor.u32 %s71, %s72
    %p74 = scmp.eq.s32.totalorder %s73, 0
    %s76 = sadd.s32 %s75, 1
    %s77 = scalar_select %p74, %s75, %s76
    %p80 = pneg %p74
    %p81 = scmp.eq.s32.totalorder %s9, 1
    %p82 = por %p80, %p81
    %p83 = scmp.ne.s32.totalorder %s75, %s78
    %p84 = scmp.eq.s32.totalorder %s9, 0
    %p85 = por %p83, %p84
    %p86 = scmp.ne.s32.totalorder %s75, %s78
    %p87 = scmp.eq.s32.totalorder %s14, 1
    %p88 = por %p86, %p87
    %p89 = scmp.ne.s32.totalorder %s78, %s79
    %p90 = scmp.eq.s32.totalorder %s14, 0
    %p91 = por %p89, %p90
    %p92 = scmp.ne.s32.totalorder %s78, %s79
    %p93 = scmp.eq.s32.totalorder %s15, 1
    %p94 = por %p92, %p93
    %p96 = scmp.ne.s32.totalorder %s79, %s95
    %p97 = scmp.eq.s32.totalorder %s15, 0
    %p98 = por %p96, %p97
    %s99 = ssub.s32 %s16, %s28
    %s100 = ssub.s32 %s17, %s24
    %s101 = sor.u32 %s99, %s100
    %p102 = scmp.eq.s32.totalorder %s101, 0
    %s104 = sadd.s32 %s103, 1
    %s105 = scalar_select %p102, %s103, %s104
    %p108 = pneg %p102
    %p109 = scmp.eq.s32.totalorder %s9, 1
    %p110 = por %p108, %p109
    %p111 = scmp.ne.s32.totalorder %s103, %s106
    %p112 = scmp.eq.s32.totalorder %s9, 0
    %p113 = por %p111, %p112
    %p114 = scmp.ne.s32.totalorder %s103, %s106
    %p115 = scmp.eq.s32.totalorder %s14, 1
    %p116 = por %p114, %p115
    %p117 = scmp.ne.s32.totalorder %s106, %s107
    %p118 = scmp.eq.s32.totalorder %s14, 0
    %p119 = por %p117, %p118
    %p120 = scmp.ne.s32.totalorder %s106, %s107
    %p121 = scmp.eq.s32.totalorder %s15, 1
    %p122 = por %p120, %p121
    %p124 = scmp.ne.s32.totalorder %s107, %s123
    %p125 = scmp.eq.s32.totalorder %s15, 0
    %p126 = por %p124, %p125
    %p127 = scmp.le.s32.totalorder 1, %s9
    %p128 = scmp.lt.s32.totalorder %s9, 3
    %p129 = pnand %p127, %p128
    %p130 = pneg %p129
    // Predicated region
    $region9: #{downsampling_conv_block.1} parent=5 // pred_check
      _
    $region10: #{downsampling_conv_block.1} parent=5 // pred_check_branch
      %132 = sbr.rel (%p129) target = $region12
    $region11: #{downsampling_conv_block.1} parent=5 // pred_region
      %s133 = ssub.s32 %s9, 1
      // Predicated region
      $region13: #{downsampling_conv_block.1} parent=11 // pred_check
        %p134 = pneg %p42
      $region14: #{downsampling_conv_block.1} parent=11 // pred_check_branch
        %136 = sbr.rel (%p134) target = $region16
      $region15: #{downsampling_conv_block.1} parent=11 // pred_region
        _
      $region16: #{downsampling_conv_block.1} parent=11 // pred_fallthru
        _
      // Predicated region
      $region17: #{downsampling_conv_block.1} parent=11 // pred_check
        %p137 = pneg %p63
      $region18: #{downsampling_conv_block.1} parent=11 // pred_check_branch
        %139 = sbr.rel (%p137) target = $region20
      $region19: #{downsampling_conv_block.1} parent=11 // pred_region
        _
      $region20: #{downsampling_conv_block.1} parent=11 // pred_fallthru
        _
    $region12: #{downsampling_conv_block.1} parent=5 // pred_fallthru
      _
    %p140 = scmp.lt.s32.totalorder %s9, 2
    // Predicated region
    $region21: #{downsampling_conv_block.1} parent=5 // pred_check
      %p141 = pneg %p140
    $region22: #{downsampling_conv_block.1} parent=5 // pred_check_branch
      %143 = sbr.rel (%p141) target = $region24
    $region23: #{downsampling_conv_block.1} parent=5 // pred_region
      // Predicated region
      $region25: #{downsampling_conv_block.1} parent=23 // pred_check
        %p144 = pneg %p85
      $region26: #{downsampling_conv_block.1} parent=23 // pred_check_branch
        %146 = sbr.rel (%p144) target = $region28
      $region27: #{downsampling_conv_block.1} parent=23 // pred_region
        %s147 = smul.u32 4, %s17
        %p148 = scmp.lt.s32.totalorder %s16, 1
        %s149 = scalar_select %p148, %s16, 1
        %p150 = scmp.lt.s32.totalorder %s147, 3
        %s151 = scalar_select %p150, %s147, 3
        %s152 = smul.addr %s149, 16
        %s153 = sadd.s32 %s151, %s152
        %s154 = smul.addr %s153, 4
        %s155 = scalar_lea.vmem %s2, %s154
        %s156 = smul.u32 4, %s17
      $region28: #{downsampling_conv_block.1} parent=23 // pred_fallthru
        _
    $region24: #{downsampling_conv_block.1} parent=5 // pred_fallthru
      _
    %p157 = scmp.le.s32.totalorder 1, %s9
    %p158 = scmp.lt.s32.totalorder %s9, 3
    %p159 = pnand %p157, %p158
    %p160 = pneg %p159
    // Predicated region
    $region29: #{downsampling_conv_block.1} parent=5 // pred_check
      _
    $region30: #{downsampling_conv_block.1} parent=5 // pred_check_branch
      %162 = sbr.rel (%p159) target = $region32
    $region31: #{downsampling_conv_block.1} parent=5 // pred_region
      %s163 = ssub.s32 %s9, 1
      %p164 = pneg %p42
      %p165 = pneg %p39
      %p166 = pneg %p63
      %p167 = pneg %p60
      %s168 = smul.u32 4, %s19
      %p169 = scmp.lt.s32.totalorder %s18, 1
      %s170 = scalar_select %p169, %s18, 1
      %p171 = scmp.lt.s32.totalorder %s168, 3
      %s172 = scalar_select %p171, %s168, 3
      %s173 = smul.addr %s170, 16
      %s174 = sadd.s32 %s172, %s173
      %s175 = smul.addr %s174, 4
      %s176 = scalar_lea.vmem %s2, %s175
      %p177 = pneg %p91
      %p178 = pneg %p88
      %p179 = pneg %p119
      %p180 = pneg %p116
      %s181 = smul.u32 4, %s19
      %p182 = scmp.lt.s32.totalorder %s18, 1
      %s183 = scalar_select %p182, %s18, 1
      %p184 = scmp.lt.s32.totalorder %s181, 3
      %s185 = scalar_select %p184, %s181, 3
      %s186 = smul.addr %s183, 4
      %s187 = sadd.s32 %s185, %s186
      %s188 = smul.addr %s187, 8
      %s189 = scalar_lea.vmem %s3, %s188
      %s190 = smul.u32 4, %s19
      %p191 = scmp.lt.s32.totalorder %s18, 1
      %s192 = scalar_select %p191, %s18, 1
      %p193 = scmp.lt.s32.totalorder %s190, 3
      %s194 = scalar_select %p193, %s190, 3
      %s195 = smul.addr %s192, 16
      %s196 = sadd.s32 %s194, %s195
      %s197 = smul.addr %s196, 4
      %s198 = scalar_lea.vmem %s2, %s197
      %s199 = smul.u32 4, %s19
      %s200 = smul.u32 4, %s19
      %p201 = scmp.lt.s32.totalorder %s18, 1
      %s202 = scalar_select %p201, %s18, 1
      %p203 = scmp.lt.s32.totalorder %s200, 3
      %s204 = scalar_select %p203, %s200, 3
      %s205 = smul.addr %s202, 4
      %s206 = sadd.s32 %s204, %s205
      %s207 = smul.addr %s206, 8
      %s208 = scalar_lea.vmem %s3, %s207
      %s209 = smul.u32 4, %s19
      %v211 = vld [vmem:[%s0] sm:$0xf]
      %v212 = vld [vmem:[%s198] sm:$0xff]
      %v213 = vld [vmem:[%s198 + $0x8] sm:$0xff]
      %v214 = vld [vmem:[%s198 + $0x10] sm:$0xff]
      %v215 = vld [vmem:[%s198 + $0x18] sm:$0xff]
      %v216 = vld [vmem:[%s198 + $0x20] sm:$0xff]
      %v217 = vld [vmem:[%s198 + $0x28] sm:$0xff]
      %v218 = vld [vmem:[%s198 + $0x30] sm:$0xff]
      %v219 = vld [vmem:[%s198 + $0x38] sm:$0xff]
      %v220 = vld [vmem:[%s1] sm:$0xff]
      %222 = vset.pattern.permute.xlu0 0
      %223 = vperm.xlu0 %222, %v220
      %v224 = vpop.permute.xlu0 %223
      %v234 = vunpack.c.l.b16 %v212
      %v235 = vunpack.c.h.b16 %v212
      %v236 = vunpack.c.l.b16 %v213
      %v237 = vunpack.c.h.b16 %v213
      %v238 = vunpack.c.l.b16 %v214
      %v239 = vunpack.c.h.b16 %v214
      %v240 = vunpack.c.l.b16 %v215
      %v241 = vunpack.c.h.b16 %v215
      %v242 = vunpack.c.l.b16 %v216
      %v243 = vunpack.c.h.b16 %v216
      %v244 = vunpack.c.l.b16 %v217
      %v245 = vunpack.c.h.b16 %v217
      %v246 = vunpack.c.l.b16 %v218
      %v247 = vunpack.c.h.b16 %v218
      %v248 = vunpack.c.l.b16 %v219
      %v249 = vunpack.c.h.b16 %v219
      %v250 = vpack.c.b16 %v238, %v234
      %v251 = vpack.c.b16 %v239, %v235
      %v252 = vpack.c.b16 %v240, %v236
      %v253 = vpack.c.b16 %v241, %v237
      %v254 = vpack.c.b16 %v246, %v242
      %v255 = vpack.c.b16 %v247, %v243
      %v256 = vpack.c.b16 %v248, %v244
      %v257 = vpack.c.b16 %v249, %v245
      %vm266 = vcmask 261120
      %v268 = vsel %vm266, %v211, 0
      %270 = vmatprep.subr.bf16.mxu0 0
      %271 = vmatpush1.bf16.msra.mxu0 0
      %272 = vmatprep.subr.bf16.mxu0 0
      %273 = vmatpush1.bf16.msra.mxu0 0
      %274 = vmatprep.subr.bf16.mxu0 0
      %275 = vmatpush1.bf16.msra.mxu0 0
      %276 = vmatprep.subr.bf16.mxu0 0
      %277 = vmatpush1.bf16.msra.mxu0 0
      %278 = vmatprep.subr.bf16.mxu0 0
      %279 = vmatpush1.bf16.msra.mxu0 0
      %280 = vmatprep.subr.bf16.mxu0 0
      %281 = vmatpush1.bf16.msra.mxu0 0
      %282 = vmatprep.subr.bf16.mxu0 %v255
      %283 = vmatpush1.bf16.msra.mxu0 %v254
      %284 = vmatprep.subr.bf16.mxu0 %v251
      %285 = vmatpush1.bf16.msra.mxu0 %v250
      %286 = vmatprep.subr.bf16.mxu0 0
      %287 = vmatpush2.bf16.msra.mxu0 0
      %288 = vmatprep.subr.bf16.mxu0 0
      %289 = vmatpush2.bf16.msra.mxu0 0
      %290 = vmatprep.subr.bf16.mxu0 0
      %291 = vmatpush2.bf16.msra.mxu0 0
      %292 = vmatprep.subr.bf16.mxu0 0
      %293 = vmatpush2.bf16.msra.mxu0 0
      %294 = vmatprep.subr.bf16.mxu0 0
      %295 = vmatpush2.bf16.msra.mxu0 0
      %296 = vmatprep.subr.bf16.mxu0 0
      %297 = vmatpush2.bf16.msra.mxu0 0
      %298 = vmatprep.subr.bf16.mxu0 0
      %299 = vmatpush2.bf16.msra.mxu0 0
      %300 = vmatprep.subr.bf16.mxu0 0
      %301 = vmatpush2.bf16.msra.mxu0 0
      %302 = vmatprep.mubr.bf16.mxu0 0
      %303 = vmatmul.mubr.bf16.gmra.mxu0 %v268
      %v304 = vpop.f32.mrf.mxu0
      %v305 = vadd.f32 %v224, %v304
      %v306 = vpop.f32.mrf.mxu0
      %v307 = vadd.f32 %v224, %v306
      %v308 = vpop.f32.mrf.mxu0
      %v309 = vpop.f32.mrf.mxu0
      %310 = vdwg.mxu0
      %311 = vmatprep.subr.bf16.mxu0 0
      %312 = vmatpush1.bf16.msra.mxu0 0
      %313 = vmatprep.subr.bf16.mxu0 0
      %314 = vmatpush1.bf16.msra.mxu0 0
      %315 = vmatprep.subr.bf16.mxu0 0
      %316 = vmatpush1.bf16.msra.mxu0 0
      %317 = vmatprep.subr.bf16.mxu0 0
      %318 = vmatpush1.bf16.msra.mxu0 0
      %319 = vmatprep.subr.bf16.mxu0 0
      %320 = vmatpush1.bf16.msra.mxu0 0
      %321 = vmatprep.subr.bf16.mxu0 0
      %322 = vmatpush1.bf16.msra.mxu0 0
      %323 = vmatprep.subr.bf16.mxu0 %v257
      %324 = vmatpush1.bf16.msra.mxu0 %v256
      %325 = vmatprep.subr.bf16.mxu0 %v253
      %326 = vmatpush1.bf16.msra.mxu0 %v252
      %327 = vmatprep.subr.bf16.mxu0 0
      %328 = vmatpush2.bf16.msra.mxu0 0
      %329 = vmatprep.subr.bf16.mxu0 0
      %330 = vmatpush2.bf16.msra.mxu0 0
      %331 = vmatprep.subr.bf16.mxu0 0
      %332 = vmatpush2.bf16.msra.mxu0 0
      %333 = vmatprep.subr.bf16.mxu0 0
      %334 = vmatpush2.bf16.msra.mxu0 0
      %335 = vmatprep.subr.bf16.mxu0 0
      %336 = vmatpush2.bf16.msra.mxu0 0
      %337 = vmatprep.subr.bf16.mxu0 0
      %338 = vmatpush2.bf16.msra.mxu0 0
      %339 = vmatprep.subr.bf16.mxu0 0
      %340 = vmatpush2.bf16.msra.mxu0 0
      %341 = vmatprep.subr.bf16.mxu0 0
      %342 = vmatpush2.bf16.msra.mxu0 0
      %343 = vmatprep.mubr.bf16.mxu0 0
      %344 = vmatmul.mubr.bf16.gmra.mxu0 %v268
      %v345 = vpop.f32.mrf.mxu0
      %v346 = vadd.f32 %v224, %v345
      %v347 = vpop.f32.mrf.mxu0
      %v348 = vadd.f32 %v224, %v347
      %v349 = vpop.f32.mrf.mxu0
      %v350 = vpop.f32.mrf.mxu0
      %351 = vdwg.mxu0
      %v352 = vmax.f32 %v305, 0.0
      %v353 = vmax.f32 %v307, 0.0
      %v354 = vmax.f32 %v346, 0.0
      %v355 = vmax.f32 %v348, 0.0
      %356 = vst [vmem:[%s208] sm:$0xff] %v352
      %357 = vst [vmem:[%s208 + $0x8] sm:$0xff] %v353
      %358 = vst [vmem:[%s208 + $0x10] sm:$0xff] %v354
      %359 = vst [vmem:[%s208 + $0x18] sm:$0xff] %v355
      %s360 = smul.u32 4, %s19
      %p361 = scmp.lt.s32.totalorder %s18, 1
      %s362 = scalar_select %p361, %s18, 1
      %p363 = scmp.lt.s32.totalorder %s360, 3
      %s364 = scalar_select %p363, %s360, 3
      %s365 = smul.addr %s362, 4
      %s366 = sadd.s32 %s364, %s365
      %s367 = smul.addr %s366, 8
      %s368 = scalar_lea.vmem %s3, %s367
      // Predicated region
      $region33: #{downsampling_conv_block.1} parent=31 // pred_check
        %p369 = pneg %p116
      $region34: #{downsampling_conv_block.1} parent=31 // pred_check_branch
        %371 = sbr.rel (%p369) target = $region36
      $region35: #{downsampling_conv_block.1} parent=31 // pred_region
        %s372 = smul.u32 4, %s19
      $region36: #{downsampling_conv_block.1} parent=31 // pred_fallthru
        _
    $region32: #{downsampling_conv_block.1} parent=5 // pred_fallthru
      _
    %p373 = scmp.le.s32.totalorder 2, %s9
    // Predicated region
    $region37: #{downsampling_conv_block.1} parent=5 // pred_check
      %p374 = pneg %p373
    $region38: #{downsampling_conv_block.1} parent=5 // pred_check_branch
      %376 = sbr.rel (%p374) target = $region40
    $region39: #{downsampling_conv_block.1} parent=5 // pred_region
      %s377 = ssub.s32 %s9, 2
      // Predicated region
      $region41: #{downsampling_conv_block.1} parent=39 // pred_check
        %p378 = pneg %p122
      $region42: #{downsampling_conv_block.1} parent=39 // pred_check_branch
        %380 = sbr.rel (%p378) target = $region44
      $region43: #{downsampling_conv_block.1} parent=39 // pred_region
        %s381 = smul.u32 4, %s21
        %p382 = scmp.lt.s32.totalorder %s20, 1
        %s383 = scalar_select %p382, %s20, 1
        %p384 = scmp.lt.s32.totalorder %s381, 3
        %s385 = scalar_select %p384, %s381, 3
        %s386 = smul.addr %s383, 4
        %s387 = sadd.s32 %s385, %s386
        %s388 = smul.addr %s387, 8
        %s389 = scalar_lea.vmem %s3, %s388
      $region44: #{downsampling_conv_block.1} parent=39 // pred_fallthru
        _
    $region40: #{downsampling_conv_block.1} parent=5 // pred_fallthru
      _
  $region6: #{downsampling_conv_block.1} parent=0 // loop_footer
    %s13 = sadd.s32 1, %s9
  $region7: #{downsampling_conv_block.1} parent=0 // loop_footer_branch
    %8 = sbr.rel target = $region3
  $region8: #{downsampling_conv_block.1} parent=0 // loop_exit
    _

</llo_original>
